<compile_context>
chip_gen: v5e
topology: v5e:2x2
jax: 0.10.0
libtpu: 0.0.40
codegen_flags: <defaults>
</compile_context>

<pallas_src>
import functools

import jax
import jax.numpy as jnp
from jax import lax
from jax.experimental import pallas as pl
from jax.experimental.pallas import tpu as pltpu

_LANES = 128
_NUM_CORES = 2  # leading "parallel" grid axis (v7x has 2 TCs; harmless elsewhere)


def _cdiv(a, b):
    return -(-a // b)


def _round_up(a, b):
    return _cdiv(a, b) * b


def _focal_loss_kernel(logit_ref, target_ref, out_ref, acc_ref, *,
                       gamma, n_valid, tile_rows, tiles_per_core):
    c = pl.program_id(0)
    k = pl.program_id(1)

    @pl.when(k == 0)
    def _():
        acc_ref[...] = jnp.zeros_like(acc_ref)

    logit = logit_ref[...].astype(jnp.float32)
    target = target_ref[...].astype(jnp.float32)

    # Stable BCE-with-logits. Exact identity of the PyTorch expression:
    #   max_val + log(exp(-max_val) + exp(-logit - max_val))
    #     == max_val + log1p(exp(-|logit|))        (max_val = max(-logit, 0))
    max_val = jnp.maximum(-logit, 0.0)
    bce = logit - logit * target + max_val + jnp.log1p(jnp.exp(-jnp.abs(logit)))

    # invprobs = logsigmoid(-logit * (2*target - 1)), stable form
    # (kept general so soft targets remain exact, matching the PyTorch module).
    z = -logit * (target * 2.0 - 1.0)
    invprobs = jnp.minimum(z, 0.0) - jnp.log1p(jnp.exp(-jnp.abs(z)))

    loss = jnp.exp(invprobs * gamma) * bce

    # Zero out the padded tail of the flattened input.
    base = (c * tiles_per_core + k) * (tile_rows * _LANES)
    row = lax.broadcasted_iota(jnp.int32, (tile_rows, _LANES), 0)
    lane = lax.broadcasted_iota(jnp.int32, (tile_rows, _LANES), 1)
    mask = (base + row * _LANES + lane) < n_valid
    loss = jnp.where(mask, loss, 0.0)

    # Fold the tile into a single-vreg accumulator (cheap vreg adds).
    acc_ref[...] += jnp.sum(loss.reshape(-1, 8, _LANES), axis=0)

    @pl.when(k == pl.num_programs(1) - 1)
    def _():
        out_ref[...] = acc_ref[...]


def focal_loss(logit, target, gamma=2.0, sample_weight=None, max_tile_rows=1024):
    """Pallas TPU implementation of FocalLoss.forward for 2-D (B, C) inputs."""
    assert logit.ndim == 2 and logit.shape == target.shape
    if sample_weight is not None:
        # TODO(synk): sample_weight would need per-sample weighting before the
        # mean; default module config uses None, so it is not implemented.
        raise NotImplementedError("sample_weight is not supported in this kernel")

    B, C = logit.shape
    n_valid = B * C

    # Lane-dense flattening: (B, C) -> (rows_padded, 128), zero padded.
    rows_needed = _cdiv(n_valid, _LANES)
    tile_rows = min(max_tile_rows, _round_up(_cdiv(rows_needed, _NUM_CORES), 8))
    tiles_per_core = _cdiv(rows_needed, _NUM_CORES * tile_rows)
    rows_padded = _NUM_CORES * tiles_per_core * tile_rows
    pad = rows_padded * _LANES - n_valid

    logit2d = jnp.pad(logit.reshape(-1), (0, pad)).reshape(rows_padded, _LANES)
    target2d = jnp.pad(target.reshape(-1), (0, pad)).reshape(rows_padded, _LANES)

    kernel = functools.partial(
        _focal_loss_kernel, gamma=float(gamma), n_valid=n_valid,
        tile_rows=tile_rows, tiles_per_core=tiles_per_core)

    row_map = lambda c, k: (c * tiles_per_core + k, 0)

    partials = pl.pallas_call(
        kernel,
        out_shape=jax.ShapeDtypeStruct((_NUM_CORES * 8, _LANES), jnp.float32),
        grid_spec=pltpu.PrefetchScalarGridSpec(
            num_scalar_prefetch=0,
            grid=(_NUM_CORES, tiles_per_core),
            in_specs=[
                pl.BlockSpec((tile_rows, _LANES), row_map),
                pl.BlockSpec((tile_rows, _LANES), row_map),
            ],
            out_specs=pl.BlockSpec((8, _LANES), lambda c, k: (c, 0)),
            scratch_shapes=[pltpu.VMEM((8, _LANES), jnp.float32)],
        ),
        compiler_params=pltpu.CompilerParams(
            dimension_semantics=("parallel", "arbitrary")),
    )(logit2d, target2d)

    # Combine per-core partial sums; mean over the batch dimension.
    return jnp.sum(partials) * (1.0 / B)


def _focal_loss_ref(logit, target, gamma=2.0):
    """Pure-JAX reference mirroring the PyTorch forward, for verification."""
    logit = logit.astype(jnp.float32)
    target = target.astype(jnp.float32)
    max_val = jnp.maximum(-logit, 0.0)
    loss = (logit - logit * target + max_val
            + jnp.log(jnp.exp(-max_val) + jnp.exp(-logit - max_val)))
    invprobs = jax.nn.log_sigmoid(-logit * (target * 2.0 - 1.0))
    loss = jnp.exp(invprobs * gamma) * loss
    loss = jnp.sum(loss, axis=1)
    return jnp.mean(loss)


if __name__ == "__main__":
    key = jax.random.PRNGKey(0)
    k1, k2 = jax.random.split(key)

    B, C = 8, 32  # small shapes: batch=8 samples, 32 binary labels each
    logit = jax.random.normal(k1, (B, C), dtype=jnp.float32) * 2.0
    target = (jax.random.uniform(k2, (B, C)) > 0.5).astype(jnp.float32)

    out = focal_loss(logit, target, gamma=2.0)
    out = jax.block_until_ready(out)

    ref = _focal_loss_ref(logit, target, gamma=2.0)
    assert jnp.allclose(out, ref, rtol=1e-5, atol=1e-5), (out, ref)

    print("KERNEL_OK")
</pallas_src>

<mosaic_0001>
module attributes {stable_mosaic.version = 11 : i64} {
  func.func @_focal_loss_kernel(%arg0: i32, %arg1: i32, %arg2: memref<8x128xf32, #tpu.memory_space<vmem>>, %arg3: memref<8x128xf32, #tpu.memory_space<vmem>>, %arg4: memref<8x128xf32, #tpu.memory_space<vmem>>, %arg5: memref<8x128xf32, #tpu.memory_space<vmem>>) attributes {dimension_semantics = [#tpu.dimension_semantics<parallel>, #tpu.dimension_semantics<arbitrary>], iteration_bounds = array<i64: 2, 1>, scalar_prefetch = 0 : i64, scratch_operands = 1 : i64, tpu.core_type = #tpu.core_type<tc>, window_params = [{transform_indices = @transform_0, window_bounds = array<i64: 8, 128>}, {transform_indices = @transform_1, window_bounds = array<i64: 8, 128>}, {transform_indices = @transform_2, window_bounds = array<i64: 8, 128>}]} {
    %c0_i32 = arith.constant 0 : i32
    %0 = arith.cmpi eq, %arg1, %c0_i32 : i32
    %1 = arith.extui %0 : i1 to i32
    %c0_i32_0 = arith.constant 0 : i32
    %2 = arith.cmpi ne, %1, %c0_i32_0 : i32
    scf.if %2 {
      %cst_20 = arith.constant 0.000000e+00 : f32
      %59 = vector.broadcast %cst_20 : f32 to vector<8x128xf32>
      %c0_21 = arith.constant 0 : index
      %c0_22 = arith.constant 0 : index
      %60 = vector.load %arg5[%c0_21, %c0_22] : memref<8x128xf32, #tpu.memory_space<vmem>>, vector<8x128xf32>
      tpu.vector_store %arg5[%c0_21, %c0_22], %59 {strides = array<i32>} : memref<8x128xf32, #tpu.memory_space<vmem>>, vector<8x128xf32>,
    } else {
    }
    %c0 = arith.constant 0 : index
    %c0_1 = arith.constant 0 : index
    %3 = vector.load %arg2[%c0, %c0_1] : memref<8x128xf32, #tpu.memory_space<vmem>>, vector<8x128xf32>
    %c0_2 = arith.constant 0 : index
    %c0_3 = arith.constant 0 : index
    %4 = vector.load %arg3[%c0_2, %c0_3] : memref<8x128xf32, #tpu.memory_space<vmem>>, vector<8x128xf32>
    %cst = arith.constant 0.000000e+00 : f32
    %5 = vector.broadcast %cst : f32 to vector<8x128xf32>
    %6 = arith.subf %5, %3 : vector<8x128xf32>
    %cst_4 = arith.constant 0.000000e+00 : f32
    %7 = vector.broadcast %cst_4 : f32 to vector<8x128xf32>
    %8 = arith.maximumf %6, %7 : vector<8x128xf32>
    %9 = arith.mulf %3, %4 : vector<8x128xf32>
    %10 = arith.subf %3, %9 : vector<8x128xf32>
    %11 = arith.addf %10, %8 : vector<8x128xf32>
    %12 = math.absf %3 : vector<8x128xf32>
    %cst_5 = arith.constant 0.000000e+00 : f32
    %13 = vector.broadcast %cst_5 : f32 to vector<8x128xf32>
    %14 = arith.subf %13, %12 : vector<8x128xf32>
    %15 = math.exp %14 : vector<8x128xf32>
    %16 = math.log1p %15 : vector<8x128xf32>
    %17 = arith.addf %11, %16 : vector<8x128xf32>
    %cst_6 = arith.constant 0.000000e+00 : f32
    %18 = vector.broadcast %cst_6 : f32 to vector<8x128xf32>
    %19 = arith.subf %18, %3 : vector<8x128xf32>
    %cst_7 = arith.constant 2.000000e+00 : f32
    %20 = vector.broadcast %cst_7 : f32 to vector<8x128xf32>
    %21 = arith.mulf %4, %20 : vector<8x128xf32>
    %cst_8 = arith.constant 1.000000e+00 : f32
    %22 = vector.broadcast %cst_8 : f32 to vector<8x128xf32>
    %23 = arith.subf %21, %22 : vector<8x128xf32>
    %24 = arith.mulf %19, %23 : vector<8x128xf32>
    %cst_9 = arith.constant 0.000000e+00 : f32
    %25 = vector.broadcast %cst_9 : f32 to vector<8x128xf32>
    %26 = arith.minimumf %24, %25 : vector<8x128xf32>
    %27 = math.absf %24 : vector<8x128xf32>
    %cst_10 = arith.constant 0.000000e+00 : f32
    %28 = vector.broadcast %cst_10 : f32 to vector<8x128xf32>
    %29 = arith.subf %28, %27 : vector<8x128xf32>
    %30 = math.exp %29 : vector<8x128xf32>
    %31 = math.log1p %30 : vector<8x128xf32>
    %32 = arith.subf %26, %31 : vector<8x128xf32>
    %cst_11 = arith.constant 2.000000e+00 : f32
    %33 = vector.broadcast %cst_11 : f32 to vector<8x128xf32>
    %34 = arith.mulf %32, %33 : vector<8x128xf32>
    %35 = math.exp %34 : vector<8x128xf32>
    %36 = arith.mulf %35, %17 : vector<8x128xf32>
    %c1_i32 = arith.constant 1 : i32
    %37 = arith.muli %arg0, %c1_i32 : i32
    %38 = arith.addi %37, %arg1 : i32
    %c1024_i32 = arith.constant 1024 : i32
    %39 = arith.muli %38, %c1024_i32 : i32
    %40 = tpu.iota {dimensions = array<i32: 0>} : vector<8x128xi32>
    %41 = tpu.iota {dimensions = array<i32: 1>} : vector<8x128xi32>
    %c128_i32 = arith.constant 128 : i32
    %42 = vector.broadcast %c128_i32 : i32 to vector<8x128xi32>
    %43 = arith.muli %40, %42 : vector<8x128xi32>
    %44 = vector.broadcast %39 : i32 to vector<8x128xi32>
    %45 = arith.addi %44, %43 : vector<8x128xi32>
    %46 = arith.addi %45, %41 : vector<8x128xi32>
    %c256_i32 = arith.constant 256 : i32
    %47 = vector.broadcast %c256_i32 : i32 to vector<8x128xi32>
    %48 = arith.cmpi slt, %46, %47 : vector<8x128xi32>
    %cst_12 = arith.constant 0.000000e+00 : f32
    %49 = vector.broadcast %cst_12 : f32 to vector<8x128xf32>
    %50 = arith.select %48, %36, %49 : vector<8x128xi1>, vector<8x128xf32>
    %c0_13 = arith.constant 0 : index
    %c0_14 = arith.constant 0 : index
    %51 = vector.load %arg5[%c0_13, %c0_14] : memref<8x128xf32, #tpu.memory_space<vmem>>, vector<8x128xf32>
    %52 = vector.shape_cast %50 : vector<8x128xf32> to vector<1x8x128xf32>
    %cst_15 = arith.constant dense<0.000000e+00> : vector<8x128xf32>
    %53 = vector.multi_reduction <add>, %52, %cst_15 [0] : vector<1x8x128xf32> to vector<8x128xf32>
    %54 = arith.addf %51, %53 : vector<8x128xf32>
    %c0_16 = arith.constant 0 : index
    %c0_17 = arith.constant 0 : index
    %55 = vector.load %arg5[%c0_16, %c0_17] : memref<8x128xf32, #tpu.memory_space<vmem>>, vector<8x128xf32>
    tpu.vector_store %arg5[%c0_16, %c0_17], %54 {strides = array<i32>} : memref<8x128xf32, #tpu.memory_space<vmem>>, vector<8x128xf32>,
    %c0_i32_18 = arith.constant 0 : i32
    %56 = arith.cmpi eq, %arg1, %c0_i32_18 : i32
    %57 = arith.extui %56 : i1 to i32
    %c0_i32_19 = arith.constant 0 : i32
    %58 = arith.cmpi ne, %57, %c0_i32_19 : i32
    scf.if %58 {
      %c0_20 = arith.constant 0 : index
      %c0_21 = arith.constant 0 : index
      %59 = vector.load %arg5[%c0_20, %c0_21] : memref<8x128xf32, #tpu.memory_space<vmem>>, vector<8x128xf32>
      %c0_22 = arith.constant 0 : index
      %c0_23 = arith.constant 0 : index
      %60 = vector.load %arg4[%c0_22, %c0_23] : memref<8x128xf32, #tpu.memory_space<vmem>>, vector<8x128xf32>
      tpu.vector_store %arg4[%c0_22, %c0_23], %59 {strides = array<i32>} : memref<8x128xf32, #tpu.memory_space<vmem>>, vector<8x128xf32>,
    } else {
    }
    return
  }
  func.func @transform_0(%arg0: i32, %arg1: i32) -> (i32, i32) {
    %c1_i32 = arith.constant 1 : i32
    %0 = arith.muli %arg0, %c1_i32 : i32
    %1 = arith.addi %0, %arg1 : i32
    %c0_i32 = arith.constant 0 : i32
    %c0_i32_0 = arith.constant 0 : i32
    return %1, %c0_i32 : i32, i32
  }
  func.func @transform_1(%arg0: i32, %arg1: i32) -> (i32, i32) {
    %c1_i32 = arith.constant 1 : i32
    %0 = arith.muli %arg0, %c1_i32 : i32
    %1 = arith.addi %0, %arg1 : i32
    %c0_i32 = arith.constant 0 : i32
    %c0_i32_0 = arith.constant 0 : i32
    return %1, %c0_i32 : i32, i32
  }
  func.func @transform_2(%arg0: i32, %arg1: i32) -> (i32, i32) {
    %c0_i32 = arith.constant 0 : i32
    %c0_i32_0 = arith.constant 0 : i32
    return %arg0, %c0_i32 : i32, i32
  }
}

</mosaic_0001>

<llo_original>
// kernel: tpu_custom_call.1
$region0: #{tpu_custom_call.1}
  #allocation0 [shape = 'u32[]', space=smem, size = 0x4, offset = 0x4, fixed_abs, tag = 'smem constant byte address 0x4 - core index']
  #allocation1 [shape = 'u32[72,128]{1,0:T(1,128)}', space=vmem, size = 0x9000, scoped, tag = 'internal scratch']
  #allocation2 [shape = 'f32[8,128]{1,0:T(8,128)}', space=vmem, size = 0x1000, scoped, tag = 'scratch operand']
  %s0 = inlined_call_operand.hbm [shape: f32[16,128], index: 0, kind: input, shape index: {}]
  %s1 = inlined_call_operand.hbm [shape: f32[16,128], index: 1, kind: input, shape index: {}]
  %s2 = inlined_call_operand.hbm [shape: f32[16,128], index: 2, kind: output, shape index: {}]
  %s3 = sld [smem:[#allocation0]]
  $region57: #{tpu_custom_call.1} parent=0
    _
  %s5 = ssub.s32 1, %s3
  %s6 = scalar_select 0, %s5, %s3
  $region1: #{tpu_custom_call.1} parent=0
    #allocation3 [shape = 'u8[8192]{0}', space=vmem, size = 0x2000, scoped, tag = 'input window, operand 0']
    #allocation4 [shape = 's32[2]{0}', space=sflag, size = 0x8, scoped, tag = 'scoped memory for tpu_custom_call.1']
    #allocation5 [shape = 's32[2]{0}', space=sflag, size = 0x8, scoped, tag = 'scoped memory for tpu_custom_call.1']
    #allocation6 [shape = 'u8[8192]{0}', space=vmem, size = 0x2000, scoped, tag = 'input window, operand 1']
    #allocation7 [shape = 's32[2]{0}', space=sflag, size = 0x8, scoped, tag = 'scoped memory for tpu_custom_call.1']
    #allocation8 [shape = 'u8[8192]{0}', space=vmem, size = 0x2000, scoped, tag = 'output window, operand 0']
    %7 = vsyncpa [#allocation4], 0
    %s8 = scalar_lea.sflag [#allocation4], 1
    %9 = vsyncpa %s8, 0
    %10 = vsyncpa [#allocation7], 0
    %s11 = scalar_lea.sflag [#allocation7], 1
    %12 = vsyncpa %s11, 0
    %13 = vsyncpa [#allocation5], 0
    %s14 = scalar_lea.sflag [#allocation5], 1
    %15 = vsyncpa %s14, 0
    loop: start=0, step=1, limit=4
    $region2: #{tpu_custom_call.1} parent=1 // loop_pre_header
      _
    $region3: #{tpu_custom_call.1} parent=1 // loop_header
      %s17 = sphi 0, %s21
      %p18 = scmp.ge.s32.totalorder %s17, 4
      %s24 = sphi 0, %s36
      %s25 = sphi 0, %s32
      %s26 = sphi 0, %s24
      %s27 = sphi 0, %s25
      %s28 = sphi 0, %s26
      %s29 = sphi 0, %s27
      %s41 = sphi 0, %s43
      %s44 = sphi 0, %s41
      %s45 = sphi 0, %s44
      %s61 = sphi 0, %s45
      %s69 = sphi 0, %s71
      %s72 = sphi 0, %s69
      %s73 = sphi 0, %s72
      %s89 = sphi 0, %s73
      %s95 = sphi 0, %s97
      %s98 = sphi 0, %s95
      %s99 = sphi 0, %s98
      %s115 = sphi 0, %s99
    $region4: #{tpu_custom_call.1} parent=1 // loop_header_branch
      %20 = sbr.rel (%p18) target = $region8
    $region5: #{tpu_custom_call.1} parent=1 // loop_body
      %s22 = ssub.s32 %s17, 1
      %s23 = ssub.s32 %s17, 2
      %s30 = sadd.s32 1, %s25
      %p31 = scmp.ge.s32.totalorder %s30, 1
      %s32 = scalar_select %p31, 0, %s30
      %s33 = sadd.s32 1, %s24
      %s34 = scalar_select %p31, %s33, %s24
      %p35 = scmp.ge.s32.totalorder %s34, 2
      %s36 = scalar_select %p35, 0, %s34
      %s37 = sadd.s32 %s24, %s25
      %s38 = sadd.s32 %s36, %s32
      %s39 = ssub.s32 %s37, %s38
      %p40 = scmp.eq.s32.totalorder %s39, 0
      %s42 = sadd.s32 %s41, 1
      %s43 = scalar_select %p40, %s41, %s42
      %p46 = pneg %p40
      %p47 = scmp.eq.s32.totalorder %s17, 1
      %p48 = por %p46, %p47
      %p49 = scmp.ne.s32.totalorder %s41, %s44
      %p50 = scmp.eq.s32.totalorder %s17, 0
      %p51 = por %p49, %p50
      %p52 = scmp.ne.s32.totalorder %s41, %s44
      %p53 = scmp.eq.s32.totalorder %s22, 1
      %p54 = por %p52, %p53
      %p55 = scmp.ne.s32.totalorder %s44, %s45
      %p56 = scmp.eq.s32.totalorder %s22, 0
      %p57 = por %p55, %p56
      %p58 = scmp.ne.s32.totalorder %s44, %s45
      %p59 = scmp.eq.s32.totalorder %s23, 1
      %p60 = por %p58, %p59
      %p62 = scmp.ne.s32.totalorder %s45, %s61
      %p63 = scmp.eq.s32.totalorder %s23, 0
      %p64 = por %p62, %p63
      %s65 = sadd.s32 %s24, %s25
      %s66 = sadd.s32 %s36, %s32
      %s67 = ssub.s32 %s65, %s66
      %p68 = scmp.eq.s32.totalorder %s67, 0
      %s70 = sadd.s32 %s69, 1
      %s71 = scalar_select %p68, %s69, %s70
      %p74 = pneg %p68
      %p75 = scmp.eq.s32.totalorder %s17, 1
      %p76 = por %p74, %p75
      %p77 = scmp.ne.s32.totalorder %s69, %s72
      %p78 = scmp.eq.s32.totalorder %s17, 0
      %p79 = por %p77, %p78
      %p80 = scmp.ne.s32.totalorder %s69, %s72
      %p81 = scmp.eq.s32.totalorder %s22, 1
      %p82 = por %p80, %p81
      %p83 = scmp.ne.s32.totalorder %s72, %s73
      %p84 = scmp.eq.s32.totalorder %s22, 0
      %p85 = por %p83, %p84
      %p86 = scmp.ne.s32.totalorder %s72, %s73
      %p87 = scmp.eq.s32.totalorder %s23, 1
      %p88 = por %p86, %p87
      %p90 = scmp.ne.s32.totalorder %s73, %s89
      %p91 = scmp.eq.s32.totalorder %s23, 0
      %p92 = por %p90, %p91
      %s93 = ssub.s32 %s24, %s36
      %p94 = scmp.eq.s32.totalorder %s93, 0
      %s96 = sadd.s32 %s95, 1
      %s97 = scalar_select %p94, %s95, %s96
      %p100 = pneg %p94
      %p101 = scmp.eq.s32.totalorder %s17, 1
      %p102 = por %p100, %p101
      %p103 = scmp.ne.s32.totalorder %s95, %s98
      %p104 = scmp.eq.s32.totalorder %s17, 0
      %p105 = por %p103, %p104
      %p106 = scmp.ne.s32.totalorder %s95, %s98
      %p107 = scmp.eq.s32.totalorder %s22, 1
      %p108 = por %p106, %p107
      %p109 = scmp.ne.s32.totalorder %s98, %s99
      %p110 = scmp.eq.s32.totalorder %s22, 0
      %p111 = por %p109, %p110
      %p112 = scmp.ne.s32.totalorder %s98, %s99
      %p113 = scmp.eq.s32.totalorder %s23, 1
      %p114 = por %p112, %p113
      %p116 = scmp.ne.s32.totalorder %s99, %s115
      %p117 = scmp.eq.s32.totalorder %s23, 0
      %p118 = por %p116, %p117
      %p119 = scmp.le.s32.totalorder 1, %s17
      %p120 = scmp.lt.s32.totalorder %s17, 3
      %p121 = pnand %p119, %p120
      %p122 = pneg %p121
      // Predicated region
      $region9: #{tpu_custom_call.1} parent=5 // pred_check
        _
      $region10: #{tpu_custom_call.1} parent=5 // pred_check_branch
        %124 = sbr.rel (%p121) target = $region12
      $region11: #{tpu_custom_call.1} parent=5 // pred_region
        %s125 = ssub.s32 %s17, 1
      $region12: #{tpu_custom_call.1} parent=5 // pred_fallthru
        _
      %p126 = scmp.lt.s32.totalorder %s17, 2
      // Predicated region
      $region13: #{tpu_custom_call.1} parent=5 // pred_check
        %p127 = pneg %p126
      $region14: #{tpu_custom_call.1} parent=5 // pred_check_branch
        %129 = sbr.rel (%p127) target = $region16
      $region15: #{tpu_custom_call.1} parent=5 // pred_region
        // Predicated region
        $region17: #{tpu_custom_call.1} parent=15 // pred_check
          %p130 = pneg %p51
        $region18: #{tpu_custom_call.1} parent=15 // pred_check_branch
          %132 = sbr.rel (%p130) target = $region20
        $region19: #{tpu_custom_call.1} parent=15 // pred_region
          %s133 = sand.u32 %s41, 1
          %s134 = scalar_lea.sflag [#allocation4], %s133
          %s135 = sand.u32 %s41, 1
          %s136 = smul.addr %s135, 8
          %s137 = scalar_lea.vmem [#allocation3], %s136
          %s138 = sadd.s32 %s24, %s25
          %140 = vsyncadd %s134, 0
          %s141 = smul.addr %s138, 8
          %s142 = scalar_lea.hbm %s0, %s141
          %s144 = sshll.u32 %s142, 4
          %s145 = int_to_ptr.hbm [resolvable:$true] %s144
          %s146 = sshll.u32 %s137, 4
          %s147 = int_to_ptr.vmem [resolvable:$true] %s146
          %149 = dma.hbm_to_vmem [thread:$0]  %s145, 128, %s147, %s134
        $region20: #{tpu_custom_call.1} parent=15 // pred_fallthru
          _
        // Predicated region
        $region21: #{tpu_custom_call.1} parent=15 // pred_check
          %p150 = pneg %p79
        $region22: #{tpu_custom_call.1} parent=15 // pred_check_branch
          %152 = sbr.rel (%p150) target = $region24
        $region23: #{tpu_custom_call.1} parent=15 // pred_region
          %s153 = sand.u32 %s69, 1
          %s154 = scalar_lea.sflag [#allocation7], %s153
          %s155 = sand.u32 %s69, 1
          %s156 = smul.addr %s155, 8
          %s157 = scalar_lea.vmem [#allocation6], %s156
          %s158 = sadd.s32 %s24, %s25
          %160 = vsyncadd %s154, 0
          %s161 = smul.addr %s158, 8
          %s162 = scalar_lea.hbm %s1, %s161
          %s164 = sshll.u32 %s162, 4
          %s165 = int_to_ptr.hbm [resolvable:$true] %s164
          %s166 = sshll.u32 %s157, 4
          %s167 = int_to_ptr.vmem [resolvable:$true] %s166
          %169 = dma.hbm_to_vmem [thread:$0]  %s165, 128, %s167, %s154
        $region24: #{tpu_custom_call.1} parent=15 // pred_fallthru
          _
      $region16: #{tpu_custom_call.1} parent=5 // pred_fallthru
        _
      %p170 = scmp.le.s32.totalorder 1, %s17
      %p171 = scmp.lt.s32.totalorder %s17, 3
      %p172 = pnand %p170, %p171
      %p173 = pneg %p172
      // Predicated region
      $region25: #{tpu_custom_call.1} parent=5 // pred_check
        _
      $region26: #{tpu_custom_call.1} parent=5 // pred_check_branch
        %175 = sbr.rel (%p172) target = $region28
      $region27: #{tpu_custom_call.1} parent=5 // pred_region
        %s176 = ssub.s32 %s17, 1
        %s177 = sand.u32 %s44, 1
        %s178 = scalar_lea.sflag [#allocation4], %s177
        %s179 = sand.u32 %s44, 1
        %s180 = smul.addr %s179, 8
        %s181 = scalar_lea.vmem [#allocation3], %s180
        // Predicated region
        $region29: #{tpu_custom_call.1} parent=27 // pred_check
          %p182 = pneg %p57
        $region30: #{tpu_custom_call.1} parent=27 // pred_check_branch
          %184 = sbr.rel (%p182) target = $region32
        $region31: #{tpu_custom_call.1} parent=27 // pred_region
          %186 = dma.done %s178, 128
        $region32: #{tpu_custom_call.1} parent=27 // pred_fallthru
          _
        %s187 = sand.u32 %s72, 1
        %s188 = scalar_lea.sflag [#allocation7], %s187
        %s189 = sand.u32 %s72, 1
        %s190 = smul.addr %s189, 8
        %s191 = scalar_lea.vmem [#allocation6], %s190
        // Predicated region
        $region33: #{tpu_custom_call.1} parent=27 // pred_check
          %p192 = pneg %p85
        $region34: #{tpu_custom_call.1} parent=27 // pred_check_branch
          %194 = sbr.rel (%p192) target = $region36
        $region35: #{tpu_custom_call.1} parent=27 // pred_region
          %196 = dma.done %s188, 128
        $region36: #{tpu_custom_call.1} parent=27 // pred_fallthru
          _
        %s197 = sand.u32 %s44, 1
        %s198 = scalar_lea.sflag [#allocation4], %s197
        %s199 = sand.u32 %s44, 1
        %s200 = smul.addr %s199, 8
        %s201 = scalar_lea.vmem [#allocation3], %s200
        %p202 = pneg %p57
        %p203 = pneg %p54
        %s204 = sand.u32 %s72, 1
        %s205 = scalar_lea.sflag [#allocation7], %s204
        %s206 = sand.u32 %s72, 1
        %s207 = smul.addr %s206, 8
        %s208 = scalar_lea.vmem [#allocation6], %s207
        %p209 = pneg %p85
        %p210 = pneg %p82
        %p211 = pneg %p111
        %p212 = pneg %p108
        %s213 = sand.u32 %s98, 1
        %s214 = scalar_lea.sflag [#allocation5], %s213
        %s215 = sand.u32 %s98, 1
        %s216 = smul.addr %s215, 8
        %s217 = scalar_lea.vmem [#allocation8], %s216
        %s218 = sadd.s32 %s26, %s27
        %s219 = sadd.s32 %s26, %s27
        %p220 = scmp.eq.s32.totalorder %s27, 0
        // Predicated region
        $region37: #{tpu_custom_call.1} parent=27 // pred_check
          %p221 = pneg %p220
        $region38: #{tpu_custom_call.1} parent=27 // pred_check_branch
          %223 = sbr.rel (%p221) target = $region40
        $region39: #{tpu_custom_call.1} parent=27 // pred_region
          %224 = vst [vmem:[#allocation2] sm:$0xff] 0.0
        $region40: #{tpu_custom_call.1} parent=27 // pred_fallthru
          _
        %v225 = vld [vmem:[%s181] sm:$0xff]
        %v226 = vld [vmem:[%s191] sm:$0xff]
        %v227 = vsub.f32 0.0, %v225
        %v228 = vmax.f32 %v227, 0.0
        %v229 = vmul.f32 %v225, %v226
        %v230 = vsub.f32 %v225, %v229
        %v231 = vadd.f32 %v230, %v228
        %v232 = vand.u32 2147483647, %v225
        %v233 = vsub.f32 0.0, %v232
        %v234 = vmul.f32 %v233, 1.442695
        %v235 = vpow.pop %v234
        %v236 = vadd.f32 %v235, 1.0
        %v237 = vlog2.pop %v236
        %v238 = vmul.f32 %v237, 0.6931472
        %v239 = vmul.f32 -0.5, %v235
        %v240 = vadd.f32 %v239, 1.0
        %v241 = vmul.f32 %v240, %v235
        %v242 = vand.u32 2147483647, %v235
        %vm243 = vcmp.lt.f32.partialorder %v242, 0.0004427343
        %v244 = vsel %vm243, %v241, %v238
        %v245 = vadd.f32 %v231, %v244
        %v246 = vmul.f32 %v226, 2.0
        %v247 = vsub.f32 %v246, 1.0
        %v248 = vmul.f32 %v227, %v247
        %v249 = vmin.f32 %v248, 0.0
        %v250 = vand.u32 2147483647, %v248
        %v251 = vsub.f32 0.0, %v250
        %v252 = vmul.f32 %v251, 1.442695
        %v253 = vpow.pop %v252
        %v254 = vadd.f32 %v253, 1.0
        %v255 = vlog2.pop %v254
        %v256 = vmul.f32 %v255, 0.6931472
        %v257 = vmul.f32 -0.5, %v253
        %v258 = vadd.f32 %v257, 1.0
        %v259 = vmul.f32 %v258, %v253
        %v260 = vand.u32 2147483647, %v253
        %vm261 = vcmp.lt.f32.partialorder %v260, 0.0004427343
        %v262 = vsel %vm261, %v259, %v256
        %v263 = vsub.f32 %v249, %v262
        %v264 = vmul.f32 %v263, 2.0
        %v265 = vmul.f32 %v264, 1.442695
        %v266 = vpow.pop %v265
        %v267 = vmul.f32 %v266, %v245
        %s268 = sadd.s32 %s26, %s27
        %s269 = smul.u32 %s268, 1024
        %v270 = vlaneseq
        %v271 = vshrl.u32 %v270, 7
        %v272 = vlaneseq
        %v273 = vand.u32 %v272, 127
        %v274 = vmul.u32 %v271, 128
        %v275 = vstv %s269
        %v276 = vadd.s32 %v275, %v274
        %v277 = vadd.s32 %v276, %v273
        %vm278 = vcmp.lt.s32.totalorder %v277, 256
        %v279 = vsel %vm278, %v267, 0.0
        %v280 = vld [vmem:[#allocation2] sm:$0xff]
        %v281 = vadd.f32 %v279, 0.0
        %v282 = vadd.f32 %v280, %v281
        %283 = vst [vmem:[#allocation2] sm:$0xff] %v282
        // Predicated region
        $region41: #{tpu_custom_call.1} parent=27 // pred_check
          %p284 = pneg %p220
        $region42: #{tpu_custom_call.1} parent=27 // pred_check_branch
          %286 = sbr.rel (%p284) target = $region44
        $region43: #{tpu_custom_call.1} parent=27 // pred_region
          %v287 = vld [vmem:[#allocation2] sm:$0xff]
          %288 = vst [vmem:[%s217] sm:$0xff] %v287
        $region44: #{tpu_custom_call.1} parent=27 // pred_fallthru
          _
        %s289 = sand.u32 %s98, 1
        %s290 = scalar_lea.sflag [#allocation5], %s289
        %s291 = sand.u32 %s98, 1
        %s292 = smul.addr %s291, 8
        %s293 = scalar_lea.vmem [#allocation8], %s292
        // Predicated region
        $region45: #{tpu_custom_call.1} parent=27 // pred_check
          %p294 = pneg %p108
        $region46: #{tpu_custom_call.1} parent=27 // pred_check_branch
          %296 = sbr.rel (%p294) target = $region48
        $region47: #{tpu_custom_call.1} parent=27 // pred_region
          %298 = vsyncadd %s290, 0
          %s299 = smul.addr %s26, 8
          %s300 = scalar_lea.hbm %s2, %s299
          %s302 = sshll.u32 %s293, 4
          %s303 = int_to_ptr.vmem [resolvable:$true] %s302
          %s304 = sshll.u32 %s300, 4
          %s305 = int_to_ptr.hbm [resolvable:$true] %s304
          %307 = dma.vmem_to_hbm [thread:$0]  %s303, 128, %s305, %s290
        $region48: #{tpu_custom_call.1} parent=27 // pred_fallthru
          _
      $region28: #{tpu_custom_call.1} parent=5 // pred_fallthru
        _
      %p308 = scmp.le.s32.totalorder 2, %s17
      // Predicated region
      $region49: #{tpu_custom_call.1} parent=5 // pred_check
        %p309 = pneg %p308
      $region50: #{tpu_custom_call.1} parent=5 // pred_check_branch
        %311 = sbr.rel (%p309) target = $region52
      $region51: #{tpu_custom_call.1} parent=5 // pred_region
        %s312 = ssub.s32 %s17, 2
        // Predicated region
        $region53: #{tpu_custom_call.1} parent=51 // pred_check
          %p313 = pneg %p114
        $region54: #{tpu_custom_call.1} parent=51 // pred_check_branch
          %315 = sbr.rel (%p313) target = $region56
        $region55: #{tpu_custom_call.1} parent=51 // pred_region
          %s316 = sand.u32 %s99, 1
          %s317 = scalar_lea.sflag [#allocation5], %s316
          %s318 = sand.u32 %s99, 1
          %s319 = smul.addr %s318, 8
          %s320 = scalar_lea.vmem [#allocation8], %s319
          %322 = dma.done %s317, 128
        $region56: #{tpu_custom_call.1} parent=51 // pred_fallthru
          _
      $region52: #{tpu_custom_call.1} parent=5 // pred_fallthru
        _
    $region6: #{tpu_custom_call.1} parent=1 // loop_footer
      %s21 = sadd.s32 1, %s17
    $region7: #{tpu_custom_call.1} parent=1 // loop_footer_branch
      %16 = sbr.rel target = $region3
    $region8: #{tpu_custom_call.1} parent=1 // loop_exit
      _
    %323 = vsyncpa [#allocation4], 1
    %s324 = scalar_lea.sflag [#allocation4], 1
    %325 = vsyncpa %s324, 1
    %326 = vsyncpa [#allocation7], 1
    %s327 = scalar_lea.sflag [#allocation7], 1
    %328 = vsyncpa %s327, 1
    %329 = vsyncpa [#allocation5], 1
    %s330 = scalar_lea.sflag [#allocation5], 1
    %331 = vsyncpa %s330, 1

</llo_original>
